<compile_context>
chip_gen: v6e
topology: v6e:2x2x1
jax: 0.10.0
libtpu: 0.0.40
codegen_flags: <defaults>
</compile_context>

<pallas_src>
import jax
import jax.numpy as jnp
from jax.experimental import pallas as pl
from jax.experimental.pallas import tpu as pltpu


def _round_up(n, m):
    return ((n + m - 1) // m) * m


# ---------------------------------------------------------------------------
# Kernel
# ---------------------------------------------------------------------------
def actor_critic_kernel(x_ref, w_ref, bsm_ref, out_ref):
    """Fused actor+critic MLP.

    x_ref   : [B_TILE, NI_pad]        input block
    w_ref   : [NI_pad + 3*F, F]       packed block-diagonal weights (resident)
    bsm_ref : [8, F]                  rows: b1, s1, b2, s2, b3, s3, b4, tanh_mask
    out_ref : [B_TILE, F]             col 0 = value, cols 1..num_outputs = mu
    """
    ni = x_ref.shape[1]   # static
    f = out_ref.shape[1]  # static (multiple of 128)

    x = x_ref[...]
    bsm = bsm_ref[...]    # one (8,128*k) tile; static row slices below

    def linear(h, row0, rows, b_row):
        w = w_ref[row0:row0 + rows, :]            # static, sublane-aligned slice
        return jnp.dot(h, w, preferred_element_type=jnp.float32) + bsm[b_row:b_row + 1, :]

    def act(h, s_row):
        s = bsm[s_row:s_row + 1, :]               # PReLU slope (0.0 == ReLU)
        return jnp.where(h > 0, h, s * h)

    h = act(linear(x, 0, ni, 0), 1)
    h = act(linear(h, ni, f, 2), 3)
    h = act(linear(h, ni + f, f, 4), 5)
    h = linear(h, ni + 2 * f, f, 6)

    mask = bsm[7:8, :]                            # 1.0 on actor (mu) columns
    out_ref[...] = jnp.where(mask > 0, jnp.tanh(h), h)


# ---------------------------------------------------------------------------
# Host-side parameter packing
# ---------------------------------------------------------------------------
def _pack_params(params, ni_pad, fused, hidden, num_inputs, num_outputs):
    f32 = jnp.float32
    H, F = hidden, fused

    # layer 1: [NI_pad, F] -- critic cols [0:H], actor cols [H:2H], rest 0
    w1 = jnp.zeros((ni_pad, F), f32)
    w1 = w1.at[:num_inputs, 0:H].set(params["cw1"].astype(f32))
    w1 = w1.at[:num_inputs, H:2 * H].set(params["aw1"].astype(f32))

    def block_diag(cw, aw):
        w = jnp.zeros((F, F), f32)
        w = w.at[0:H, 0:H].set(cw.astype(f32))
        w = w.at[H:2 * H, H:2 * H].set(aw.astype(f32))
        return w

    w2 = block_diag(params["cw2"], params["aw2"])
    w3 = block_diag(params["cw3"], params["aw3"])

    # layer 4: critic -> col 0, actor -> cols 1..num_outputs, rest exact zeros
    w4 = jnp.zeros((F, F), f32)
    w4 = w4.at[0:H, 0:1].set(params["cw4"].astype(f32))
    w4 = w4.at[H:2 * H, 1:1 + num_outputs].set(params["aw4"].astype(f32))

    w_packed = jnp.concatenate([w1, w2, w3, w4], axis=0)  # [NI_pad + 3F, F]

    def bias_row(cb, ab):
        r = jnp.zeros((1, F), f32)
        r = r.at[:, 0:H].set(cb.astype(f32))
        r = r.at[:, H:2 * H].set(ab.astype(f32))
        return r

    def slope_row(ca):
        r = jnp.zeros((1, F), f32)                 # actor / padding cols: slope 0 == ReLU
        r = r.at[:, 0:H].set(jnp.broadcast_to(ca.astype(f32), (1, H)))
        return r

    b4 = jnp.zeros((1, F), f32)
    b4 = b4.at[:, 0:1].set(params["cb4"].astype(f32))
    b4 = b4.at[:, 1:1 + num_outputs].set(params["ab4"].astype(f32))

    mask = jnp.zeros((1, F), f32).at[:, 1:1 + num_outputs].set(1.0)

    bsm_packed = jnp.concatenate(
        [
            bias_row(params["cb1"], params["ab1"]), slope_row(params["ca1"]),
            bias_row(params["cb2"], params["ab2"]), slope_row(params["ca2"]),
            bias_row(params["cb3"], params["ab3"]), slope_row(params["ca3"]),
            b4, mask,
        ],
        axis=0,
    )  # [8, F] -> exactly one VMEM tile when F == 128
    return w_packed, bsm_packed


# ---------------------------------------------------------------------------
# Wrapper
# ---------------------------------------------------------------------------
def actor_critic_forward(x, params, *, b_tile=512):
    B, num_inputs = x.shape
    hidden = params["cw1"].shape[1]
    num_outputs = params["aw4"].shape[1]

    # Fused / padded widths (lane-dense).
    F = max(128, _round_up(2 * hidden, 128), _round_up(1 + num_outputs, 128))
    NI = _round_up(num_inputs, 8)

    w_packed, bsm_packed = _pack_params(params, NI, F, hidden, num_inputs, num_outputs)

    # Batch tiling: blocked grid so large B double-buffers x in / out DMAs;
    # keep f32 everywhere (bf16 streaming is a v6e-only bandwidth option).
    bt = min(b_tile, _round_up(B, 8))
    B_pad = _round_up(B, bt)
    x_pad = jnp.zeros((B_pad, NI), jnp.float32).at[:B, :num_inputs].set(x.astype(jnp.float32))

    grid = (B_pad // bt,)
    out = pl.pallas_call(
        actor_critic_kernel,
        out_shape=jax.ShapeDtypeStruct((B_pad, F), jnp.float32),
        grid=grid,
        in_specs=[
            pl.BlockSpec((bt, NI), lambda i: (i, 0)),              # x: blocked over batch
            pl.BlockSpec(w_packed.shape, lambda i: (0, 0)),        # weights: resident
            pl.BlockSpec(bsm_packed.shape, lambda i: (0, 0)),      # bias/slope/mask: resident
        ],
        out_specs=pl.BlockSpec((bt, F), lambda i: (i, 0)),
        compiler_params=pltpu.CompilerParams(dimension_semantics=("parallel",)),
    )(x_pad, w_packed, bsm_packed)

    value = out[:B, 0:1]
    mu = out[:B, 1:1 + num_outputs]
    # scale is batch-independent -> computed in the wrapper, not the kernel.
    scale = jnp.broadcast_to(jnp.exp(params["log_std"].astype(jnp.float32)) * 0.1, mu.shape)
    return mu, scale, value


# ---------------------------------------------------------------------------
# Init (matches PyTorch init_weights: W ~ N(0, 0.01), b = 0.1; PReLU slope 0.25)
# ---------------------------------------------------------------------------
def init_params(key, num_inputs, num_outputs, hidden_size, std=0.0):
    dims_c = [(num_inputs, hidden_size), (hidden_size, hidden_size),
              (hidden_size, hidden_size), (hidden_size, 1)]
    dims_a = [(num_inputs, hidden_size), (hidden_size, hidden_size),
              (hidden_size, hidden_size), (hidden_size, num_outputs)]
    keys = jax.random.split(key, len(dims_c) + len(dims_a))
    params = {}
    for i, (din, dout) in enumerate(dims_c):
        params[f"cw{i+1}"] = 0.01 * jax.random.normal(keys[i], (din, dout), jnp.float32)
        params[f"cb{i+1}"] = jnp.full((1, dout), 0.1, jnp.float32)
    for i, (din, dout) in enumerate(dims_a):
        params[f"aw{i+1}"] = 0.01 * jax.random.normal(keys[len(dims_c) + i], (din, dout), jnp.float32)
        params[f"ab{i+1}"] = jnp.full((1, dout), 0.1, jnp.float32)
    for i in range(3):
        params[f"ca{i+1}"] = jnp.full((1, 1), 0.25, jnp.float32)  # nn.PReLU() default
    params["log_std"] = jnp.full((1, num_outputs), std, jnp.float32)
    return params


# ---------------------------------------------------------------------------
# Pure-JAX reference (unfused towers) for correctness checking
# ---------------------------------------------------------------------------
def reference_forward(x, p):
    def prelu(h, a):
        return jnp.where(h > 0, h, a * h)
    h = prelu(x @ p["cw1"] + p["cb1"], p["ca1"])
    h = prelu(h @ p["cw2"] + p["cb2"], p["ca2"])
    h = prelu(h @ p["cw3"] + p["cb3"], p["ca3"])
    value = h @ p["cw4"] + p["cb4"]
    g = jnp.maximum(x @ p["aw1"] + p["ab1"], 0.0)
    g = jnp.maximum(g @ p["aw2"] + p["ab2"], 0.0)
    g = jnp.maximum(g @ p["aw3"] + p["ab3"], 0.0)
    mu = jnp.tanh(g @ p["aw4"] + p["ab4"])
    scale = jnp.broadcast_to(jnp.exp(p["log_std"]) * 0.1, mu.shape)
    return mu, scale, value


if __name__ == "__main__":
    B, NUM_INPUTS, NUM_OUTPUTS, HIDDEN = 8, 16, 4, 32

    key = jax.random.PRNGKey(0)
    kx, kp = jax.random.split(key)
    x = jax.random.normal(kx, (B, NUM_INPUTS), jnp.float32)
    params = init_params(kp, NUM_INPUTS, NUM_OUTPUTS, HIDDEN, std=0.0)

    mu, scale, value = actor_critic_forward(x, params)
    jax.block_until_ready((mu, scale, value))

    mu_r, scale_r, value_r = reference_forward(x, params)
    assert mu.shape == (B, NUM_OUTPUTS) and scale.shape == (B, NUM_OUTPUTS) and value.shape == (B, 1)
    assert jnp.allclose(mu, mu_r, atol=1e-5), "mu mismatch"
    assert jnp.allclose(scale, scale_r, atol=1e-6), "scale mismatch"
    assert jnp.allclose(value, value_r, atol=1e-5), "value mismatch"

    print("KERNEL_OK")
</pallas_src>

<mosaic_0001>
module attributes {stable_mosaic.version = 11 : i64} {
  func.func @actor_critic_kernel(%arg0: i32, %arg1: memref<8x16xf32, #tpu.memory_space<vmem>>, %arg2: memref<400x128xf32, #tpu.memory_space<vmem>>, %arg3: memref<8x128xf32, #tpu.memory_space<vmem>>, %arg4: memref<8x128xf32, #tpu.memory_space<vmem>>) attributes {dimension_semantics = [#tpu.dimension_semantics<parallel>], iteration_bounds = array<i64: 1>, scalar_prefetch = 0 : i64, scratch_operands = 0 : i64, tpu.core_type = #tpu.core_type<tc>, window_params = [{transform_indices = @transform_0, window_bounds = array<i64: 8, 16>}, {pipeline_mode = #tpu.pipeline_mode<synchronous>, transform_indices = @transform_1, window_bounds = array<i64: 400, 128>}, {pipeline_mode = #tpu.pipeline_mode<synchronous>, transform_indices = @transform_2, window_bounds = array<i64: 8, 128>}, {transform_indices = @transform_3, window_bounds = array<i64: 8, 128>}]} {
    %c0 = arith.constant 0 : index
    %c0_0 = arith.constant 0 : index
    %0 = vector.load %arg1[%c0, %c0_0] : memref<8x16xf32, #tpu.memory_space<vmem>>, vector<8x16xf32>
    %c0_1 = arith.constant 0 : index
    %c0_2 = arith.constant 0 : index
    %1 = vector.load %arg3[%c0_1, %c0_2] : memref<8x128xf32, #tpu.memory_space<vmem>>, vector<8x128xf32>
    %c0_3 = arith.constant 0 : index
    %c0_4 = arith.constant 0 : index
    %2 = vector.load %arg2[%c0_3, %c0_4] : memref<400x128xf32, #tpu.memory_space<vmem>>, vector<16x128xf32>
    %cst = arith.constant dense<0.000000e+00> : vector<8x128xf32>
    %3 = tpu.matmul %0, %2, %cst {dimension_numbers = #tpu.dot_dimension_numbers<[1], [0], [0], [1], [0, 0, 1, 1], [], []>} : vector<8x16xf32>, vector<16x128xf32>, vector<8x128xf32> -> vector<8x128xf32>
    %4 = vector.extract_strided_slice %1 {offsets = [0, 0], sizes = [1, 128], strides = [1, 1]} : vector<8x128xf32> to vector<1x128xf32>
    %5 = vector.broadcast %4 : vector<1x128xf32> to vector<8x128xf32>
    %6 = arith.addf %3, %5 : vector<8x128xf32>
    %7 = vector.extract_strided_slice %1 {offsets = [1, 0], sizes = [1, 128], strides = [1, 1]} : vector<8x128xf32> to vector<1x128xf32>
    %cst_5 = arith.constant 0.000000e+00 : f32
    %8 = vector.broadcast %cst_5 : f32 to vector<8x128xf32>
    %9 = arith.cmpf ogt, %6, %8 : vector<8x128xf32>
    %10 = vector.broadcast %7 : vector<1x128xf32> to vector<8x128xf32>
    %11 = arith.mulf %10, %6 : vector<8x128xf32>
    %12 = arith.select %9, %6, %11 : vector<8x128xi1>, vector<8x128xf32>
    %c16 = arith.constant 16 : index
    %c0_6 = arith.constant 0 : index
    %13 = vector.load %arg2[%c16, %c0_6] : memref<400x128xf32, #tpu.memory_space<vmem>>, vector<128x128xf32>
    %cst_7 = arith.constant dense<0.000000e+00> : vector<8x128xf32>
    %14 = tpu.matmul %12, %13, %cst_7 {dimension_numbers = #tpu.dot_dimension_numbers<[1], [0], [0], [1], [0, 0, 1, 1], [], []>} : vector<8x128xf32>, vector<128x128xf32>, vector<8x128xf32> -> vector<8x128xf32>
    %15 = vector.extract_strided_slice %1 {offsets = [2, 0], sizes = [1, 128], strides = [1, 1]} : vector<8x128xf32> to vector<1x128xf32>
    %16 = vector.broadcast %15 : vector<1x128xf32> to vector<8x128xf32>
    %17 = arith.addf %14, %16 : vector<8x128xf32>
    %18 = vector.extract_strided_slice %1 {offsets = [3, 0], sizes = [1, 128], strides = [1, 1]} : vector<8x128xf32> to vector<1x128xf32>
    %cst_8 = arith.constant 0.000000e+00 : f32
    %19 = vector.broadcast %cst_8 : f32 to vector<8x128xf32>
    %20 = arith.cmpf ogt, %17, %19 : vector<8x128xf32>
    %21 = vector.broadcast %18 : vector<1x128xf32> to vector<8x128xf32>
    %22 = arith.mulf %21, %17 : vector<8x128xf32>
    %23 = arith.select %20, %17, %22 : vector<8x128xi1>, vector<8x128xf32>
    %c144 = arith.constant 144 : index
    %c0_9 = arith.constant 0 : index
    %24 = vector.load %arg2[%c144, %c0_9] : memref<400x128xf32, #tpu.memory_space<vmem>>, vector<128x128xf32>
    %cst_10 = arith.constant dense<0.000000e+00> : vector<8x128xf32>
    %25 = tpu.matmul %23, %24, %cst_10 {dimension_numbers = #tpu.dot_dimension_numbers<[1], [0], [0], [1], [0, 0, 1, 1], [], []>} : vector<8x128xf32>, vector<128x128xf32>, vector<8x128xf32> -> vector<8x128xf32>
    %26 = vector.extract_strided_slice %1 {offsets = [4, 0], sizes = [1, 128], strides = [1, 1]} : vector<8x128xf32> to vector<1x128xf32>
    %27 = vector.broadcast %26 : vector<1x128xf32> to vector<8x128xf32>
    %28 = arith.addf %25, %27 : vector<8x128xf32>
    %29 = vector.extract_strided_slice %1 {offsets = [5, 0], sizes = [1, 128], strides = [1, 1]} : vector<8x128xf32> to vector<1x128xf32>
    %cst_11 = arith.constant 0.000000e+00 : f32
    %30 = vector.broadcast %cst_11 : f32 to vector<8x128xf32>
    %31 = arith.cmpf ogt, %28, %30 : vector<8x128xf32>
    %32 = vector.broadcast %29 : vector<1x128xf32> to vector<8x128xf32>
    %33 = arith.mulf %32, %28 : vector<8x128xf32>
    %34 = arith.select %31, %28, %33 : vector<8x128xi1>, vector<8x128xf32>
    %c272 = arith.constant 272 : index
    %c0_12 = arith.constant 0 : index
    %35 = vector.load %arg2[%c272, %c0_12] : memref<400x128xf32, #tpu.memory_space<vmem>>, vector<128x128xf32>
    %cst_13 = arith.constant dense<0.000000e+00> : vector<8x128xf32>
    %36 = tpu.matmul %34, %35, %cst_13 {dimension_numbers = #tpu.dot_dimension_numbers<[1], [0], [0], [1], [0, 0, 1, 1], [], []>} : vector<8x128xf32>, vector<128x128xf32>, vector<8x128xf32> -> vector<8x128xf32>
    %37 = vector.extract_strided_slice %1 {offsets = [6, 0], sizes = [1, 128], strides = [1, 1]} : vector<8x128xf32> to vector<1x128xf32>
    %38 = vector.broadcast %37 : vector<1x128xf32> to vector<8x128xf32>
    %39 = arith.addf %36, %38 : vector<8x128xf32>
    %40 = vector.extract_strided_slice %1 {offsets = [7, 0], sizes = [1, 128], strides = [1, 1]} : vector<8x128xf32> to vector<1x128xf32>
    %cst_14 = arith.constant 0.000000e+00 : f32
    %41 = vector.broadcast %cst_14 : f32 to vector<1x128xf32>
    %42 = arith.cmpf ogt, %40, %41 : vector<1x128xf32>
    %43 = math.tanh %39 : vector<8x128xf32>
    %44 = vector.shape_cast %42 : vector<1x128xi1> to vector<1x128xi1>
    %45 = vector.broadcast %44 : vector<1x128xi1> to vector<8x128xi1>
    %46 = arith.select %45, %43, %39 : vector<8x128xi1>, vector<8x128xf32>
    %c0_15 = arith.constant 0 : index
    %c0_16 = arith.constant 0 : index
    %47 = vector.load %arg4[%c0_15, %c0_16] : memref<8x128xf32, #tpu.memory_space<vmem>>, vector<8x128xf32>
    tpu.vector_store %arg4[%c0_15, %c0_16], %46 {strides = array<i32>} : memref<8x128xf32, #tpu.memory_space<vmem>>, vector<8x128xf32>,
    return
  }
  func.func @transform_0(%arg0: i32) -> (i32, i32) {
    %c0_i32 = arith.constant 0 : i32
    %c0_i32_0 = arith.constant 0 : i32
    return %arg0, %c0_i32 : i32, i32
  }
  func.func @transform_1(%arg0: i32) -> (i32, i32) {
    %c0_i32 = arith.constant 0 : i32
    %c0_i32_0 = arith.constant 0 : i32
    %c0_i32_1 = arith.constant 0 : i32
    return %c0_i32, %c0_i32_0 : i32, i32
  }
  func.func @transform_2(%arg0: i32) -> (i32, i32) {
    %c0_i32 = arith.constant 0 : i32
    %c0_i32_0 = arith.constant 0 : i32
    %c0_i32_1 = arith.constant 0 : i32
    return %c0_i32, %c0_i32_0 : i32, i32
  }
  func.func @transform_3(%arg0: i32) -> (i32, i32) {
    %c0_i32 = arith.constant 0 : i32
    %c0_i32_0 = arith.constant 0 : i32
    return %arg0, %c0_i32 : i32, i32
  }
}

</mosaic_0001>

<llo_original>
// kernel: tpu_custom_call.1
$region0: #{tpu_custom_call.1}
  #allocation0 [shape = 'u32[]', space=smem, size = 0x4, offset = 0x4, fixed_abs, tag = 'smem constant byte address 0x4 - core index']
  #allocation1 [shape = 'u32[144,128]{1,0:T(1,128)}', space=vmem, size = 0x12000, scoped, tag = 'internal scratch']
  %s0 = inlined_call_operand.hbm [shape: f32[8,16], index: 0, kind: input, shape index: {}]
  %s1 = inlined_call_operand.hbm [shape: f32[400,128], index: 1, kind: input, shape index: {}]
  %s2 = inlined_call_operand.hbm [shape: f32[8,128], index: 2, kind: input, shape index: {}]
  %s3 = inlined_call_operand.hbm [shape: f32[8,128], index: 3, kind: output, shape index: {}]
  %s4 = sld [smem:[#allocation0]]
  $region34: #{tpu_custom_call.1} parent=0
    _
  %s6 = ssub.s32 1, %s4
  %s7 = scalar_select 0, %s6, %s4
  $region1: #{tpu_custom_call.1} parent=0
    #allocation2 [shape = 'u8[4096]{0}', space=vmem, size = 0x1000, scoped, tag = 'input window, operand 0, single buffered']
    #allocation3 [shape = 's32[1]{0}', space=sflag, size = 0x4, scoped, tag = 'scoped memory for tpu_custom_call.1']
    #allocation4 [shape = 's32[1]{0}', space=sflag, size = 0x4, scoped, tag = 'scoped memory for tpu_custom_call.1']
    #allocation5 [shape = 'u8[204800]{0}', space=vmem, size = 0x32000, scoped, tag = 'input window, operand 1, single buffered']
    #allocation6 [shape = 's32[1]{0}', space=sflag, size = 0x4, scoped, tag = 'scoped memory for tpu_custom_call.1']
    #allocation7 [shape = 'u8[4096]{0}', space=vmem, size = 0x1000, scoped, tag = 'input window, operand 2, single buffered']
    #allocation8 [shape = 'u8[4096]{0}', space=vmem, size = 0x1000, scoped, tag = 'output window, operand 0, single buffered']
    %8 = vsyncpa [#allocation3], 0
    %9 = vsyncpa [#allocation6], 0
    %10 = vsyncpa [#allocation4], 0
    // Predicated region
    $region2: #{tpu_custom_call.1} parent=1 // pred_check
      _
    $region3: #{tpu_custom_call.1} parent=1 // pred_check_branch
      %12 = sbr.rel (0) target = $region5
    $region4: #{tpu_custom_call.1} parent=1 // pred_region
      %s14 = ssub.s32 128, 128
      %15 = vsyncadd [#allocation3], %s14
      %s17 = sshll.u32 [#allocation2], 4
      %s18 = int_to_ptr.vmem [resolvable:$true] %s17
      %20 = dma.hbm_to_vmem [thread:$0]  %s0, 128, %s18, [#allocation3]
    $region5: #{tpu_custom_call.1} parent=1 // pred_fallthru
      _
    // Predicated region
    $region6: #{tpu_custom_call.1} parent=1 // pred_check
      _
    $region7: #{tpu_custom_call.1} parent=1 // pred_check_branch
      %22 = sbr.rel (0) target = $region9
    $region8: #{tpu_custom_call.1} parent=1 // pred_region
      %s24 = ssub.s32 6400, 6400
      %25 = vsyncadd [#allocation6], %s24
      %s26 = sshll.u32 [#allocation5], 4
      %s27 = int_to_ptr.vmem [resolvable:$true] %s26
      %32 = dma.hbm_to_vmem [thread:$0]  %s1, 6400, %s27, [#allocation6], 128, 128, 8
    $region9: #{tpu_custom_call.1} parent=1 // pred_fallthru
      _
    // Predicated region
    $region10: #{tpu_custom_call.1} parent=1 // pred_check
      _
    $region11: #{tpu_custom_call.1} parent=1 // pred_check_branch
      %34 = sbr.rel (0) target = $region13
    $region12: #{tpu_custom_call.1} parent=1 // pred_region
      %s36 = ssub.s32 128, 128
      %37 = vsyncadd [#allocation6], %s36
      %s39 = sshll.u32 [#allocation7], 4
      %s40 = int_to_ptr.vmem [resolvable:$true] %s39
      %42 = dma.hbm_to_vmem [thread:$0]  %s2, 128, %s40, [#allocation6]
    $region13: #{tpu_custom_call.1} parent=1 // pred_fallthru
      _
    // Predicated region
    $region14: #{tpu_custom_call.1} parent=1 // pred_check
      _
    $region15: #{tpu_custom_call.1} parent=1 // pred_check_branch
      %44 = sbr.rel (0) target = $region17
    $region16: #{tpu_custom_call.1} parent=1 // pred_region
      %45 = dma.done [#allocation3], 128
    $region17: #{tpu_custom_call.1} parent=1 // pred_fallthru
      _
    // Predicated region
    $region18: #{tpu_custom_call.1} parent=1 // pred_check
      _
    $region19: #{tpu_custom_call.1} parent=1 // pred_check_branch
      %47 = sbr.rel (0) target = $region21
    $region20: #{tpu_custom_call.1} parent=1 // pred_region
      %48 = dma.done [#allocation6], 6400
    $region21: #{tpu_custom_call.1} parent=1 // pred_fallthru
      _
    // Predicated region
    $region22: #{tpu_custom_call.1} parent=1 // pred_check
      _
    $region23: #{tpu_custom_call.1} parent=1 // pred_check_branch
      %50 = sbr.rel (0) target = $region25
    $region24: #{tpu_custom_call.1} parent=1 // pred_region
      %51 = dma.done [#allocation6], 128
    $region25: #{tpu_custom_call.1} parent=1 // pred_fallthru
      _
    %v52 = vld [vmem:[#allocation2] sm:$0xff]
    %v53 = vld [vmem:[#allocation7] sm:$0xff]
    %v54 = vld [vmem:[#allocation5] sm:$0xff]
    %v55 = vld [vmem:[#allocation5 + $0x8] sm:$0xff]
    %v56 = vlaneseq
    %v57 = vshrl.u32 %v56, 7
    %v58 = vsub.s32 0, %v57
    %v59 = vrot.slane %v53, %v58
    %vm60 = vcmask 130048
    %v62 = vsel %vm60, %v52, 0
    %64 = vmatprep.subr.mxu0 0.0
    %65 = vmatpush1.msra.mxu0 0.0
    %66 = vmatprep.subr.mxu0 0.0
    %67 = vmatpush1.msra.mxu0 0.0
    %68 = vmatprep.subr.mxu0 0.0
    %69 = vmatpush1.msra.mxu0 0.0
    %70 = vmatprep.subr.mxu0 0.0
    %71 = vmatpush1.msra.mxu0 0.0
    %72 = vmatprep.subr.mxu0 0.0
    %73 = vmatpush1.msra.mxu0 0.0
    %74 = vmatprep.subr.mxu0 0.0
    %75 = vmatpush1.msra.mxu0 0.0
    %76 = vmatprep.subr.mxu0 0.0
    %77 = vmatpush1.msra.mxu0 0.0
    %78 = vmatprep.subr.mxu0 0.0
    %79 = vmatpush1.msra.mxu0 0.0
    %80 = vmatprep.subr.mxu0 0.0
    %81 = vmatpush1.msra.mxu0 0.0
    %82 = vmatprep.subr.mxu0 0.0
    %83 = vmatpush1.msra.mxu0 0.0
    %84 = vmatprep.subr.mxu0 0.0
    %85 = vmatpush1.msra.mxu0 0.0
    %86 = vmatprep.subr.mxu0 0.0
    %87 = vmatpush1.msra.mxu0 0.0
    %88 = vmatprep.subr.mxu0 0.0
    %89 = vmatpush1.msra.mxu0 0.0
    %90 = vmatprep.subr.mxu0 0.0
    %91 = vmatpush1.msra.mxu0 0.0
    %92 = vmatprep.subr.mxu0 0.0
    %93 = vmatpush1.msra.mxu0 %v55
    %94 = vmatprep.subr.mxu0 0.0
    %95 = vmatpush1.msra.mxu0 %v54
    %96 = vmatprep.subr.mxu0 0.0
    %97 = vmatpush2.msra.mxu0 0.0
    %98 = vmatprep.subr.mxu0 0.0
    %99 = vmatpush2.msra.mxu0 0.0
    %100 = vmatprep.subr.mxu0 0.0
    %101 = vmatpush2.msra.mxu0 0.0
    %102 = vmatprep.subr.mxu0 0.0
    %103 = vmatpush2.msra.mxu0 0.0
    %104 = vmatprep.subr.mxu0 0.0
    %105 = vmatpush2.msra.mxu0 0.0
    %106 = vmatprep.subr.mxu0 0.0
    %107 = vmatpush2.msra.mxu0 0.0
    %108 = vmatprep.subr.mxu0 0.0
    %109 = vmatpush2.msra.mxu0 0.0
    %110 = vmatprep.subr.mxu0 0.0
    %111 = vmatpush2.msra.mxu0 0.0
    %112 = vmatprep.subr.mxu0 0.0
    %113 = vmatpush2.msra.mxu0 0.0
    %114 = vmatprep.subr.mxu0 0.0
    %115 = vmatpush2.msra.mxu0 0.0
    %116 = vmatprep.subr.mxu0 0.0
    %117 = vmatpush2.msra.mxu0 0.0
    %118 = vmatprep.subr.mxu0 0.0
    %119 = vmatpush2.msra.mxu0 0.0
    %120 = vmatprep.subr.mxu0 0.0
    %121 = vmatpush2.msra.mxu0 0.0
    %122 = vmatprep.subr.mxu0 0.0
    %123 = vmatpush2.msra.mxu0 0.0
    %124 = vmatprep.subr.mxu0 0.0
    %125 = vmatpush2.msra.mxu0 0.0
    %126 = vmatprep.subr.mxu0 0.0
    %127 = vmatpush2.msra.mxu0 0.0
    %128 = vmatprep.mubr.f32.mxu0 0.0
    %129 = vmatmul.mubr.f32.gmra.mxu0 %v62
    %v130 = vpop.f32.mrf.mxu0
    %v131 = vadd.f32 %v59, %v130
    %v132 = vpop.f32.mrf.mxu0
    %133 = vdwg.mxu0
    %vm134 = vcmp.gt.f32.partialorder %v131, 0.0
    %v135 = vlaneseq
    %v136 = vshrl.u32 %v135, 7
    %v137 = vsub.s32 1, %v136
    %v138 = vrot.slane %v53, %v137
    %v139 = vmul.f32 %v138, %v131
    %v140 = vsel %vm134, %v131, %v139
    %v141 = vld [vmem:[#allocation5 + $0x10] sm:$0xff]
    %v142 = vld [vmem:[#allocation5 + $0x18] sm:$0xff]
    %v143 = vld [vmem:[#allocation5 + $0x20] sm:$0xff]
    %v144 = vld [vmem:[#allocation5 + $0x28] sm:$0xff]
    %v145 = vld [vmem:[#allocation5 + $0x30] sm:$0xff]
    %v146 = vld [vmem:[#allocation5 + $0x38] sm:$0xff]
    %v147 = vld [vmem:[#allocation5 + $0x40] sm:$0xff]
    %v148 = vld [vmem:[#allocation5 + $0x48] sm:$0xff]
    %v149 = vld [vmem:[#allocation5 + $0x50] sm:$0xff]
    %v150 = vld [vmem:[#allocation5 + $0x58] sm:$0xff]
    %v151 = vld [vmem:[#allocation5 + $0x60] sm:$0xff]
    %v152 = vld [vmem:[#allocation5 + $0x68] sm:$0xff]
    %v153 = vld [vmem:[#allocation5 + $0x70] sm:$0xff]
    %v154 = vld [vmem:[#allocation5 + $0x78] sm:$0xff]
    %v155 = vld [vmem:[#allocation5 + $0x80] sm:$0xff]
    %v156 = vld [vmem:[#allocation5 + $0x88] sm:$0xff]
    %v157 = vlaneseq
    %v158 = vshrl.u32 %v157, 7
    %v159 = vsub.s32 2, %v158
    %v160 = vrot.slane %v53, %v159
    %161 = vmatprep.subr.mxu0 0.0
    %162 = vmatpush1.msra.mxu0 %v156
    %163 = vmatprep.subr.mxu0 0.0
    %164 = vmatpush1.msra.mxu0 %v155
    %165 = vmatprep.subr.mxu0 0.0
    %166 = vmatpush1.msra.mxu0 %v154
    %167 = vmatprep.subr.mxu0 0.0
    %168 = vmatpush1.msra.mxu0 %v153
    %169 = vmatprep.subr.mxu0 0.0
    %170 = vmatpush1.msra.mxu0 %v152
    %171 = vmatprep.subr.mxu0 0.0
    %172 = vmatpush1.msra.mxu0 %v151
    %173 = vmatprep.subr.mxu0 0.0
    %174 = vmatpush1.msra.mxu0 %v150
    %175 = vmatprep.subr.mxu0 0.0
    %176 = vmatpush1.msra.mxu0 %v149
    %177 = vmatprep.subr.mxu0 0.0
    %178 = vmatpush1.msra.mxu0 %v148
    %179 = vmatprep.subr.mxu0 0.0
    %180 = vmatpush1.msra.mxu0 %v147
    %181 = vmatprep.subr.mxu0 0.0
    %182 = vmatpush1.msra.mxu0 %v146
    %183 = vmatprep.subr.mxu0 0.0
    %184 = vmatpush1.msra.mxu0 %v145
    %185 = vmatprep.subr.mxu0 0.0
    %186 = vmatpush1.msra.mxu0 %v144
    %187 = vmatprep.subr.mxu0 0.0
    %188 = vmatpush1.msra.mxu0 %v143
    %189 = vmatprep.subr.mxu0 0.0
    %190 = vmatpush1.msra.mxu0 %v142
    %191 = vmatprep.subr.mxu0 0.0
    %192 = vmatpush1.msra.mxu0 %v141
    %193 = vmatprep.subr.mxu0 0.0
    %194 = vmatpush2.msra.mxu0 0.0
    %195 = vmatprep.subr.mxu0 0.0
    %196 = vmatpush2.msra.mxu0 0.0
    %197 = vmatprep.subr.mxu0 0.0
    %198 = vmatpush2.msra.mxu0 0.0
    %199 = vmatprep.subr.mxu0 0.0
    %200 = vmatpush2.msra.mxu0 0.0
    %201 = vmatprep.subr.mxu0 0.0
    %202 = vmatpush2.msra.mxu0 0.0
    %203 = vmatprep.subr.mxu0 0.0
    %204 = vmatpush2.msra.mxu0 0.0
    %205 = vmatprep.subr.mxu0 0.0
    %206 = vmatpush2.msra.mxu0 0.0
    %207 = vmatprep.subr.mxu0 0.0
    %208 = vmatpush2.msra.mxu0 0.0
    %209 = vmatprep.subr.mxu0 0.0
    %210 = vmatpush2.msra.mxu0 0.0
    %211 = vmatprep.subr.mxu0 0.0
    %212 = vmatpush2.msra.mxu0 0.0
    %213 = vmatprep.subr.mxu0 0.0
    %214 = vmatpush2.msra.mxu0 0.0
    %215 = vmatprep.subr.mxu0 0.0
    %216 = vmatpush2.msra.mxu0 0.0
    %217 = vmatprep.subr.mxu0 0.0
    %218 = vmatpush2.msra.mxu0 0.0
    %219 = vmatprep.subr.mxu0 0.0
    %220 = vmatpush2.msra.mxu0 0.0
    %221 = vmatprep.subr.mxu0 0.0
    %222 = vmatpush2.msra.mxu0 0.0
    %223 = vmatprep.subr.mxu0 0.0
    %224 = vmatpush2.msra.mxu0 0.0
    %225 = vmatprep.mubr.f32.mxu0 0.0
    %226 = vmatmul.mubr.f32.gmra.mxu0 %v140
    %v227 = vpop.f32.mrf.mxu0
    %v228 = vadd.f32 %v160, %v227
    %v229 = vpop.f32.mrf.mxu0
    %230 = vdwg.mxu0
    %vm231 = vcmp.gt.f32.partialorder %v228, 0.0
    %v232 = vlaneseq
    %v233 = vshrl.u32 %v232, 7
    %v234 = vsub.s32 3, %v233
    %v235 = vrot.slane %v53, %v234
    %v236 = vmul.f32 %v235, %v228
    %v237 = vsel %vm231, %v228, %v236
    %v238 = vld [vmem:[#allocation5 + $0x90] sm:$0xff]
    %v239 = vld [vmem:[#allocation5 + $0x98] sm:$0xff]
    %v240 = vld [vmem:[#allocation5 + $0xa0] sm:$0xff]
    %v241 = vld [vmem:[#allocation5 + $0xa8] sm:$0xff]
    %v242 = vld [vmem:[#allocation5 + $0xb0] sm:$0xff]
    %v243 = vld [vmem:[#allocation5 + $0xb8] sm:$0xff]
    %v244 = vld [vmem:[#allocation5 + $0xc0] sm:$0xff]
    %v245 = vld [vmem:[#allocation5 + $0xc8] sm:$0xff]
    %v246 = vld [vmem:[#allocation5 + $0xd0] sm:$0xff]
    %v247 = vld [vmem:[#allocation5 + $0xd8] sm:$0xff]
    %v248 = vld [vmem:[#allocation5 + $0xe0] sm:$0xff]
    %v249 = vld [vmem:[#allocation5 + $0xe8] sm:$0xff]
    %v250 = vld [vmem:[#allocation5 + $0xf0] sm:$0xff]
    %v251 = vld [vmem:[#allocation5 + $0xf8] sm:$0xff]
    %v252 = vld [vmem:[#allocation5 + $0x100] sm:$0xff]
    %v253 = vld [vmem:[#allocation5 + $0x108] sm:$0xff]
    %v254 = vlaneseq
    %v255 = vshrl.u32 %v254, 7
    %v256 = vsub.s32 4, %v255
    %v257 = vrot.slane %v53, %v256
    %258 = vmatprep.subr.mxu0 0.0
    %259 = vmatpush1.msra.mxu0 %v253
    %260 = vmatprep.subr.mxu0 0.0
    %261 = vmatpush1.msra.mxu0 %v252
    %262 = vmatprep.subr.mxu0 0.0
    %263 = vmatpush1.msra.mxu0 %v251
    %264 = vmatprep.subr.mxu0 0.0
    %265 = vmatpush1.msra.mxu0 %v250
    %266 = vmatprep.subr.mxu0 0.0
    %267 = vmatpush1.msra.mxu0 %v249
    %268 = vmatprep.subr.mxu0 0.0
    %269 = vmatpush1.msra.mxu0 %v248
    %270 = vmatprep.subr.mxu0 0.0
    %271 = vmatpush1.msra.mxu0 %v247
    %272 = vmatprep.subr.mxu0 0.0
    %273 = vmatpush1.msra.mxu0 %v246
    %274 = vmatprep.subr.mxu0 0.0
    %275 = vmatpush1.msra.mxu0 %v245
    %276 = vmatprep.subr.mxu0 0.0
    %277 = vmatpush1.msra.mxu0 %v244
    %278 = vmatprep.subr.mxu0 0.0
    %279 = vmatpush1.msra.mxu0 %v243
    %280 = vmatprep.subr.mxu0 0.0
    %281 = vmatpush1.msra.mxu0 %v242
    %282 = vmatprep.subr.mxu0 0.0
    %283 = vmatpush1.msra.mxu0 %v241
    %284 = vmatprep.subr.mxu0 0.0
    %285 = vmatpush1.msra.mxu0 %v240
    %286 = vmatprep.subr.mxu0 0.0
    %287 = vmatpush1.msra.mxu0 %v239
    %288 = vmatprep.subr.mxu0 0.0
    %289 = vmatpush1.msra.mxu0 %v238
    %290 = vmatprep.subr.mxu0 0.0
    %291 = vmatpush2.msra.mxu0 0.0
    %292 = vmatprep.subr.mxu0 0.0
    %293 = vmatpush2.msra.mxu0 0.0
    %294 = vmatprep.subr.mxu0 0.0
    %295 = vmatpush2.msra.mxu0 0.0
    %296 = vmatprep.subr.mxu0 0.0
    %297 = vmatpush2.msra.mxu0 0.0
    %298 = vmatprep.subr.mxu0 0.0
    %299 = vmatpush2.msra.mxu0 0.0
    %300 = vmatprep.subr.mxu0 0.0
    %301 = vmatpush2.msra.mxu0 0.0
    %302 = vmatprep.subr.mxu0 0.0
    %303 = vmatpush2.msra.mxu0 0.0
    %304 = vmatprep.subr.mxu0 0.0
    %305 = vmatpush2.msra.mxu0 0.0
    %306 = vmatprep.subr.mxu0 0.0
    %307 = vmatpush2.msra.mxu0 0.0
    %308 = vmatprep.subr.mxu0 0.0
    %309 = vmatpush2.msra.mxu0 0.0
    %310 = vmatprep.subr.mxu0 0.0
    %311 = vmatpush2.msra.mxu0 0.0
    %312 = vmatprep.subr.mxu0 0.0
    %313 = vmatpush2.msra.mxu0 0.0
    %314 = vmatprep.subr.mxu0 0.0
    %315 = vmatpush2.msra.mxu0 0.0
    %316 = vmatprep.subr.mxu0 0.0
    %317 = vmatpush2.msra.mxu0 0.0
    %318 = vmatprep.subr.mxu0 0.0
    %319 = vmatpush2.msra.mxu0 0.0
    %320 = vmatprep.subr.mxu0 0.0
    %321 = vmatpush2.msra.mxu0 0.0
    %322 = vmatprep.mubr.f32.mxu0 0.0
    %323 = vmatmul.mubr.f32.gmra.mxu0 %v237
    %v324 = vpop.f32.mrf.mxu0
    %v325 = vadd.f32 %v257, %v324
    %v326 = vpop.f32.mrf.mxu0
    %327 = vdwg.mxu0
    %vm328 = vcmp.gt.f32.partialorder %v325, 0.0
    %v329 = vlaneseq
    %v330 = vshrl.u32 %v329, 7
    %v331 = vsub.s32 5, %v330
    %v332 = vrot.slane %v53, %v331
    %v333 = vmul.f32 %v332, %v325
    %v334 = vsel %vm328, %v325, %v333
    %v335 = vld [vmem:[#allocation5 + $0x110] sm:$0xff]
    %v336 = vld [vmem:[#allocation5 + $0x118] sm:$0xff]
    %v337 = vld [vmem:[#allocation5 + $0x120] sm:$0xff]
    %v338 = vld [vmem:[#allocation5 + $0x128] sm:$0xff]
    %v339 = vld [vmem:[#allocation5 + $0x130] sm:$0xff]
    %v340 = vld [vmem:[#allocation5 + $0x138] sm:$0xff]
    %v341 = vld [vmem:[#allocation5 + $0x140] sm:$0xff]
    %v342 = vld [vmem:[#allocation5 + $0x148] sm:$0xff]
    %v343 = vld [vmem:[#allocation5 + $0x150] sm:$0xff]
    %v344 = vld [vmem:[#allocation5 + $0x158] sm:$0xff]
    %v345 = vld [vmem:[#allocation5 + $0x160] sm:$0xff]
    %v346 = vld [vmem:[#allocation5 + $0x168] sm:$0xff]
    %v347 = vld [vmem:[#allocation5 + $0x170] sm:$0xff]
    %v348 = vld [vmem:[#allocation5 + $0x178] sm:$0xff]
    %v349 = vld [vmem:[#allocation5 + $0x180] sm:$0xff]
    %v350 = vld [vmem:[#allocation5 + $0x188] sm:$0xff]
    %v351 = vlaneseq
    %v352 = vshrl.u32 %v351, 7
    %v353 = vsub.s32 6, %v352
    %v354 = vrot.slane %v53, %v353
    %355 = vmatprep.subr.mxu0 0.0
    %356 = vmatpush1.msra.mxu0 %v350
    %357 = vmatprep.subr.mxu0 0.0
    %358 = vmatpush1.msra.mxu0 %v349
    %359 = vmatprep.subr.mxu0 0.0
    %360 = vmatpush1.msra.mxu0 %v348
    %361 = vmatprep.subr.mxu0 0.0
    %362 = vmatpush1.msra.mxu0 %v347
    %363 = vmatprep.subr.mxu0 0.0
    %364 = vmatpush1.msra.mxu0 %v346
    %365 = vmatprep.subr.mxu0 0.0
    %366 = vmatpush1.msra.mxu0 %v345
    %367 = vmatprep.subr.mxu0 0.0
    %368 = vmatpush1.msra.mxu0 %v344
    %369 = vmatprep.subr.mxu0 0.0
    %370 = vmatpush1.msra.mxu0 %v343
    %371 = vmatprep.subr.mxu0 0.0
    %372 = vmatpush1.msra.mxu0 %v342
    %373 = vmatprep.subr.mxu0 0.0
    %374 = vmatpush1.msra.mxu0 %v341
    %375 = vmatprep.subr.mxu0 0.0
    %376 = vmatpush1.msra.mxu0 %v340
    %377 = vmatprep.subr.mxu0 0.0
    %378 = vmatpush1.msra.mxu0 %v339
    %379 = vmatprep.subr.mxu0 0.0
    %380 = vmatpush1.msra.mxu0 %v338
    %381 = vmatprep.subr.mxu0 0.0
    %382 = vmatpush1.msra.mxu0 %v337
    %383 = vmatprep.subr.mxu0 0.0
    %384 = vmatpush1.msra.mxu0 %v336
    %385 = vmatprep.subr.mxu0 0.0
    %386 = vmatpush1.msra.mxu0 %v335
    %387 = vmatprep.subr.mxu0 0.0
    %388 = vmatpush2.msra.mxu0 0.0
    %389 = vmatprep.subr.mxu0 0.0
    %390 = vmatpush2.msra.mxu0 0.0
    %391 = vmatprep.subr.mxu0 0.0
    %392 = vmatpush2.msra.mxu0 0.0
    %393 = vmatprep.subr.mxu0 0.0
    %394 = vmatpush2.msra.mxu0 0.0
    %395 = vmatprep.subr.mxu0 0.0
    %396 = vmatpush2.msra.mxu0 0.0
    %397 = vmatprep.subr.mxu0 0.0
    %398 = vmatpush2.msra.mxu0 0.0
    %399 = vmatprep.subr.mxu0 0.0
    %400 = vmatpush2.msra.mxu0 0.0
    %401 = vmatprep.subr.mxu0 0.0
    %402 = vmatpush2.msra.mxu0 0.0
    %403 = vmatprep.subr.mxu0 0.0
    %404 = vmatpush2.msra.mxu0 0.0
    %405 = vmatprep.subr.mxu0 0.0
    %406 = vmatpush2.msra.mxu0 0.0
    %407 = vmatprep.subr.mxu0 0.0
    %408 = vmatpush2.msra.mxu0 0.0
    %409 = vmatprep.subr.mxu0 0.0
    %410 = vmatpush2.msra.mxu0 0.0
    %411 = vmatprep.subr.mxu0 0.0
    %412 = vmatpush2.msra.mxu0 0.0
    %413 = vmatprep.subr.mxu0 0.0
    %414 = vmatpush2.msra.mxu0 0.0
    %415 = vmatprep.subr.mxu0 0.0
    %416 = vmatpush2.msra.mxu0 0.0
    %417 = vmatprep.subr.mxu0 0.0
    %418 = vmatpush2.msra.mxu0 0.0
    %419 = vmatprep.mubr.f32.mxu0 0.0
    %420 = vmatmul.mubr.f32.gmra.mxu0 %v334
    %v421 = vpop.f32.mrf.mxu0
    %v422 = vadd.f32 %v354, %v421
    %v423 = vpop.f32.mrf.mxu0
    %424 = vdwg.mxu0
    %vm425 = vcmp.gt.f32.partialorder %v53, 0.0
    %v426 = vtanh.pop %v422
    %v427 = vsel %vm425, 1, 0
    %v428 = vlaneseq
    %v429 = vshrl.u32 %v428, 7
    %v430 = vsub.s32 7, %v429
    %v431 = vrot.slane %v427, %v430
    %vm432 = vcmp.eq.s32.totalorder %v431, 1
    %v433 = vsel %vm432, %v426, %v422
    %434 = vst [vmem:[#allocation8] sm:$0xff] %v433
    // Predicated region
    $region26: #{tpu_custom_call.1} parent=1 // pred_check
      _
    $region27: #{tpu_custom_call.1} parent=1 // pred_check_branch
      %436 = sbr.rel (0) target = $region29
    $region28: #{tpu_custom_call.1} parent=1 // pred_region
      %s438 = ssub.s32 128, 128
      %439 = vsyncadd [#allocation4], %s438
      %s441 = sshll.u32 [#allocation8], 4
      %s442 = int_to_ptr.vmem [resolvable:$true] %s441
      %444 = dma.vmem_to_hbm [thread:$0]  %s442, 128, %s3, [#allocation4]
    $region29: #{tpu_custom_call.1} parent=1 // pred_fallthru
      _
    // Predicated region
    $region30: #{tpu_custom_call.1} parent=1 // pred_check
      _
    $region31: #{tpu_custom_call.1} parent=1 // pred_check_branch
      %446 = sbr.rel (0) target = $region33
    $region32: #{tpu_custom_call.1} parent=1 // pred_region
      %447 = dma.done [#allocation4], 128
    $region33: #{tpu_custom_call.1} parent=1 // pred_fallthru
      _
    %448 = vsyncpa [#allocation3], 1
    %449 = vsyncpa [#allocation6], 1
    %450 = vsyncpa [#allocation4], 1

</llo_original>
